<compile_context>
chip_gen: v6e
topology: v6e:2x2x1
jax: 0.10.0
libtpu: 0.0.40
codegen_flags: <defaults>
</compile_context>

<pallas_src>
import functools

import jax
import jax.numpy as jnp
from jax.experimental import pallas as pl
from jax.experimental.pallas import tpu as pltpu

# ---------------- model dims (small, synthetic) ----------------
B = 2                 # batch
C_IN = 4              # channels
H = 16                # height
W = 16                # width
D_IN = C_IN * H * W   # 1024 flattened features
HIDDEN = 32
NUM_CLASSES = 10
DROPOUT_P = 0.5       # nn.Dropout default in the module

# ---------------- padded (vreg-friendly) dims ----------------
B_PAD = 8             # sublane minimum
HID_PAD = 128         # lane-dense hidden
NCLS_PAD = 128        # lane-dense output


def _classifier_dropout_kernel(x_ref, w1_ref, b1_ref, w2_ref, b2_ref, bits_ref,
                               o_ref, *, keep_threshold):
    # ----- inner net: Linear -> ReLU -> Linear (MXU, f32 accumulation) -----
    h = jnp.dot(x_ref[...], w1_ref[...],
                preferred_element_type=jnp.float32) + b1_ref[...]
    h = jnp.maximum(h, 0.0)
    # w2/b2 arrive pre-scaled by 1/(1-p), so the dropout scale is already folded.
    logits = jnp.dot(h, w2_ref[...],
                     preferred_element_type=jnp.float32) + b2_ref[...]

    # ----- nn.Dropout(p), training mode: integer-domain keep test -----
    # keep prob = P(bits >= p * 2^32) = 1 - p
    keep = bits_ref[...] >= jnp.uint32(keep_threshold)
    o_ref[...] = jnp.where(keep, logits, jnp.zeros_like(logits))


def deep_classifier_with_dropout(x_nchw, w1, b1, w2, b2, mask_key,
                                 *, p=DROPOUT_P):
    """x_nchw: [B, C, H, W] f32 -> [B, NUM_CLASSES] f32 (training-mode dropout)."""
    b = x_nchw.shape[0]
    d_in = w1.shape[0]
    hid = w1.shape[1]
    n_cls = w2.shape[1]

    # ---- flatten (row-major, like torch.flatten) + pad to vreg-friendly tiles ----
    x_flat = x_nchw.reshape(b, -1)                                   # [B, D_IN]
    x_pad = jnp.zeros((B_PAD, d_in), jnp.float32).at[:b].set(x_flat)
    x_pad = x_pad.astype(jnp.bfloat16)                               # bf16 matmul operand

    w1_pad = jnp.zeros((d_in, HID_PAD), jnp.float32).at[:, :hid].set(w1)
    w1_pad = w1_pad.astype(jnp.bfloat16)
    b1_pad = jnp.zeros((1, HID_PAD), jnp.float32).at[:, :hid].set(b1)

    # fold the 1/(1-p) survivor scale into the second linear layer (constants)
    inv_keep = 1.0 / (1.0 - p)
    w2_pad = jnp.zeros((HID_PAD, NCLS_PAD), jnp.float32)
    w2_pad = w2_pad.at[:hid, :n_cls].set(w2 * inv_keep)
    b2_pad = jnp.zeros((1, NCLS_PAD), jnp.float32)
    b2_pad = b2_pad.at[:, :n_cls].set(b2 * inv_keep)

    # dropout mask bits at the padded output shape (kernel does the compare)
    bits = jax.random.bits(mask_key, (B_PAD, NCLS_PAD), dtype=jnp.uint32)
    keep_threshold = min(int(round(p * float(2 ** 32))), 2 ** 32 - 1)

    kernel = functools.partial(_classifier_dropout_kernel,
                               keep_threshold=keep_threshold)

    vmem = pl.BlockSpec(memory_space=pltpu.MemorySpace.VMEM)
    out_pad = pl.pallas_call(
        kernel,
        out_shape=jax.ShapeDtypeStruct((B_PAD, NCLS_PAD), jnp.float32),
        in_specs=[vmem, vmem, vmem, vmem, vmem, vmem],
        out_specs=vmem,
    )(x_pad, w1_pad, b1_pad, w2_pad, b2_pad, bits)

    # slice the padding back off (rows beyond B and lanes beyond NUM_CLASSES)
    return out_pad[:b, :n_cls]


if __name__ == "__main__":
    key = jax.random.PRNGKey(0)
    kx, k1, k2, k3, k4, kmask = jax.random.split(key, 6)

    # deterministic example input, NCHW like PyTorch
    x = jax.random.normal(kx, (B, C_IN, H, W), dtype=jnp.float32)

    # deterministic parameter init (PyTorch Linear-style uniform(-1/sqrt(fan_in), ...))
    lim1 = 1.0 / (D_IN ** 0.5)
    w1 = jax.random.uniform(k1, (D_IN, HIDDEN), jnp.float32, -lim1, lim1)
    b1 = jax.random.uniform(k2, (1, HIDDEN), jnp.float32, -lim1, lim1)
    lim2 = 1.0 / (HIDDEN ** 0.5)
    w2 = jax.random.uniform(k3, (HIDDEN, NUM_CLASSES), jnp.float32, -lim2, lim2)
    b2 = jax.random.uniform(k4, (1, NUM_CLASSES), jnp.float32, -lim2, lim2)

    # TODO(synk): dropout is always in training mode (matches the module's
    # forward); no eval/identity flag is implemented.
    out = deep_classifier_with_dropout(x, w1, b1, w2, b2, kmask)
    jax.block_until_ready(out)

    assert out.shape == (B, NUM_CLASSES) and out.dtype == jnp.float32
    print("KERNEL_OK")
</pallas_src>

<mosaic_0001>
module attributes {stable_mosaic.version = 11 : i64} {
  func.func @_classifier_dropout_kernel(%arg0: memref<8x1024xbf16, #tpu.memory_space<vmem>>, %arg1: memref<1024x128xbf16, #tpu.memory_space<vmem>>, %arg2: memref<1x128xf32, #tpu.memory_space<vmem>>, %arg3: memref<128x128xf32, #tpu.memory_space<vmem>>, %arg4: memref<1x128xf32, #tpu.memory_space<vmem>>, %arg5: memref<8x128xi32, #tpu.memory_space<vmem>>, %arg6: memref<8x128xf32, #tpu.memory_space<vmem>>) attributes {dimension_semantics = [], scalar_prefetch = 0 : i64, scratch_operands = 0 : i64, tpu.core_type = #tpu.core_type<tc>} {
    %c0 = arith.constant 0 : index
    %c0_0 = arith.constant 0 : index
    %0 = vector.load %arg0[%c0, %c0_0] : memref<8x1024xbf16, #tpu.memory_space<vmem>>, vector<8x1024xbf16>
    %c0_1 = arith.constant 0 : index
    %c0_2 = arith.constant 0 : index
    %1 = vector.load %arg1[%c0_1, %c0_2] : memref<1024x128xbf16, #tpu.memory_space<vmem>>, vector<1024x128xbf16>
    %cst = arith.constant dense<0.000000e+00> : vector<8x128xf32>
    %2 = tpu.matmul %0, %1, %cst {dimension_numbers = #tpu.dot_dimension_numbers<[1], [0], [0], [1], [0, 0, 1, 1], [], []>} : vector<8x1024xbf16>, vector<1024x128xbf16>, vector<8x128xf32> -> vector<8x128xf32>
    %c0_3 = arith.constant 0 : index
    %c0_4 = arith.constant 0 : index
    %3 = vector.load %arg2[%c0_3, %c0_4] : memref<1x128xf32, #tpu.memory_space<vmem>>, vector<1x128xf32>
    %4 = vector.broadcast %3 : vector<1x128xf32> to vector<8x128xf32>
    %5 = arith.addf %2, %4 : vector<8x128xf32>
    %cst_5 = arith.constant 0.000000e+00 : f32
    %6 = vector.broadcast %cst_5 : f32 to vector<8x128xf32>
    %7 = arith.maximumf %5, %6 : vector<8x128xf32>
    %c0_6 = arith.constant 0 : index
    %c0_7 = arith.constant 0 : index
    %8 = vector.load %arg3[%c0_6, %c0_7] : memref<128x128xf32, #tpu.memory_space<vmem>>, vector<128x128xf32>
    %cst_8 = arith.constant dense<0.000000e+00> : vector<8x128xf32>
    %9 = tpu.matmul %7, %8, %cst_8 {dimension_numbers = #tpu.dot_dimension_numbers<[1], [0], [0], [1], [0, 0, 1, 1], [], []>} : vector<8x128xf32>, vector<128x128xf32>, vector<8x128xf32> -> vector<8x128xf32>
    %c0_9 = arith.constant 0 : index
    %c0_10 = arith.constant 0 : index
    %10 = vector.load %arg4[%c0_9, %c0_10] : memref<1x128xf32, #tpu.memory_space<vmem>>, vector<1x128xf32>
    %11 = vector.broadcast %10 : vector<1x128xf32> to vector<8x128xf32>
    %12 = arith.addf %9, %11 : vector<8x128xf32>
    %c0_11 = arith.constant 0 : index
    %c0_12 = arith.constant 0 : index
    %13 = vector.load %arg5[%c0_11, %c0_12] : memref<8x128xi32, #tpu.memory_space<vmem>>, vector<8x128xi32>
    %c-2147483648_i32 = arith.constant -2147483648 : i32
    %14 = vector.broadcast %c-2147483648_i32 : i32 to vector<8x128xi32>
    %15 = arith.cmpi uge, %13, %14 : vector<8x128xi32>
    %cst_13 = arith.constant 0.000000e+00 : f32
    %16 = vector.broadcast %cst_13 : f32 to vector<8x128xf32>
    %17 = arith.select %15, %12, %16 : vector<8x128xi1>, vector<8x128xf32>
    %c0_14 = arith.constant 0 : index
    %c0_15 = arith.constant 0 : index
    %18 = vector.load %arg6[%c0_14, %c0_15] : memref<8x128xf32, #tpu.memory_space<vmem>>, vector<8x128xf32>
    tpu.vector_store %arg6[%c0_14, %c0_15], %17 {strides = array<i32>} : memref<8x128xf32, #tpu.memory_space<vmem>>, vector<8x128xf32>,
    return
  }
}

</mosaic_0001>

<llo_original>
// kernel: tpu_custom_call.1
$region0: #{tpu_custom_call.1}
  #allocation0 [shape = 'u32[]', space=smem, size = 0x4, offset = 0x4, fixed_abs, tag = 'smem constant byte address 0x4 - core index']
  #allocation1 [shape = 'u32[144,128]{1,0:T(1,128)}', space=vmem, size = 0x12000, scoped, tag = 'internal scratch']
  %s0 = inlined_call_operand.hbm [shape: bf16[8,1024], index: 0, kind: input, shape index: {}]
  %s1 = inlined_call_operand.hbm [shape: bf16[1024,128], index: 1, kind: input, shape index: {}]
  %s2 = inlined_call_operand.vmem [shape: f32[1,128], index: 2, kind: input, shape index: {}]
  %s3 = inlined_call_operand.hbm [shape: f32[128,128], index: 3, kind: input, shape index: {}]
  %s4 = inlined_call_operand.hbm [shape: f32[1,128], index: 4, kind: input, shape index: {}]
  %s5 = inlined_call_operand.vmem [shape: u32[8,128], index: 5, kind: input, shape index: {}]
  %s6 = inlined_call_operand.hbm [shape: f32[8,128], index: 6, kind: output, shape index: {}]
  %s7 = sld [smem:[#allocation0]]
  $region50: #{tpu_custom_call.1} parent=0
    _
  %s9 = ssub.s32 1, %s7
  %s10 = scalar_select 0, %s9, %s7
  $region1: #{tpu_custom_call.1} parent=0
    #allocation2 [shape = 'u8[16384]{0}', space=vmem, size = 0x4000, scoped, tag = 'input window, operand 0, single buffered']
    #allocation3 [shape = 's32[1]{0}', space=sflag, size = 0x4, scoped, tag = 'scoped memory for tpu_custom_call.1']
    #allocation4 [shape = 's32[1]{0}', space=sflag, size = 0x4, scoped, tag = 'scoped memory for tpu_custom_call.1']
    #allocation5 [shape = 'u8[262144]{0}', space=vmem, size = 0x40000, scoped, tag = 'input window, operand 1, single buffered']
    #allocation6 [shape = 's32[1]{0}', space=sflag, size = 0x4, scoped, tag = 'scoped memory for tpu_custom_call.1']
    #allocation7 [shape = 'u8[65536]{0}', space=vmem, size = 0x10000, scoped, tag = 'input window, operand 3, single buffered']
    #allocation8 [shape = 'u8[512]{0}', space=vmem, size = 0x400, scoped, tag = 'input window, operand 4, single buffered']
    #allocation9 [shape = 's32[1]{0}', space=sflag, size = 0x4, scoped, tag = 'scoped memory for tpu_custom_call.1']
    #allocation10 [shape = 'u8[4096]{0}', space=vmem, size = 0x1000, scoped, tag = 'output window, operand 0, single buffered']
    %11 = vsyncpa [#allocation3], 0
    %12 = vsyncpa [#allocation6], 0
    %13 = vsyncpa [#allocation9], 0
    %14 = vsyncpa [#allocation4], 0
    // Predicated region
    $region2: #{tpu_custom_call.1} parent=1 // pred_check
      _
    $region3: #{tpu_custom_call.1} parent=1 // pred_check_branch
      %16 = sbr.rel (0) target = $region5
    $region4: #{tpu_custom_call.1} parent=1 // pred_region
      %s18 = ssub.s32 512, 512
      %19 = vsyncadd [#allocation3], %s18
      %s21 = sshll.u32 [#allocation2], 4
      %s22 = int_to_ptr.vmem [resolvable:$true] %s21
      %24 = dma.hbm_to_vmem [thread:$0]  %s0, 512, %s22, [#allocation3]
    $region5: #{tpu_custom_call.1} parent=1 // pred_fallthru
      _
    // Predicated region
    $region6: #{tpu_custom_call.1} parent=1 // pred_check
      _
    $region7: #{tpu_custom_call.1} parent=1 // pred_check_branch
      %26 = sbr.rel (0) target = $region9
    $region8: #{tpu_custom_call.1} parent=1 // pred_region
      %s28 = ssub.s32 8192, 8192
      %29 = vsyncadd [#allocation6], %s28
      %s30 = sshll.u32 [#allocation5], 4
      %s31 = int_to_ptr.vmem [resolvable:$true] %s30
      %36 = dma.hbm_to_vmem [thread:$0]  %s1, 8192, %s31, [#allocation6], 64, 64, 4
    $region9: #{tpu_custom_call.1} parent=1 // pred_fallthru
      _
    // Predicated region
    $region10: #{tpu_custom_call.1} parent=1 // pred_check
      _
    $region11: #{tpu_custom_call.1} parent=1 // pred_check_branch
      %38 = sbr.rel (0) target = $region13
    $region12: #{tpu_custom_call.1} parent=1 // pred_region
      _
    $region13: #{tpu_custom_call.1} parent=1 // pred_fallthru
      _
    // Predicated region
    $region14: #{tpu_custom_call.1} parent=1 // pred_check
      _
    $region15: #{tpu_custom_call.1} parent=1 // pred_check_branch
      %40 = sbr.rel (0) target = $region17
    $region16: #{tpu_custom_call.1} parent=1 // pred_region
      %s42 = ssub.s32 2048, 2048
      %43 = vsyncadd [#allocation6], %s42
      %s44 = sshll.u32 [#allocation7], 4
      %s45 = int_to_ptr.vmem [resolvable:$true] %s44
      %50 = dma.hbm_to_vmem [thread:$0]  %s3, 2048, %s45, [#allocation6], 128, 128, 8
    $region17: #{tpu_custom_call.1} parent=1 // pred_fallthru
      _
    // Predicated region
    $region18: #{tpu_custom_call.1} parent=1 // pred_check
      _
    $region19: #{tpu_custom_call.1} parent=1 // pred_check_branch
      %52 = sbr.rel (0) target = $region21
    $region20: #{tpu_custom_call.1} parent=1 // pred_region
      %s54 = ssub.s32 16, 16
      %55 = vsyncadd [#allocation9], %s54
      %s57 = sshll.u32 [#allocation8], 4
      %s58 = int_to_ptr.vmem [resolvable:$true] %s57
      %60 = dma.hbm_to_vmem [thread:$0]  %s4, 16, %s58, [#allocation9]
    $region21: #{tpu_custom_call.1} parent=1 // pred_fallthru
      _
    // Predicated region
    $region22: #{tpu_custom_call.1} parent=1 // pred_check
      _
    $region23: #{tpu_custom_call.1} parent=1 // pred_check_branch
      %62 = sbr.rel (0) target = $region25
    $region24: #{tpu_custom_call.1} parent=1 // pred_region
      _
    $region25: #{tpu_custom_call.1} parent=1 // pred_fallthru
      _
    // Predicated region
    $region26: #{tpu_custom_call.1} parent=1 // pred_check
      _
    $region27: #{tpu_custom_call.1} parent=1 // pred_check_branch
      %64 = sbr.rel (0) target = $region29
    $region28: #{tpu_custom_call.1} parent=1 // pred_region
      %65 = dma.done [#allocation3], 512
    $region29: #{tpu_custom_call.1} parent=1 // pred_fallthru
      _
    // Predicated region
    $region30: #{tpu_custom_call.1} parent=1 // pred_check
      _
    $region31: #{tpu_custom_call.1} parent=1 // pred_check_branch
      %67 = sbr.rel (0) target = $region33
    $region32: #{tpu_custom_call.1} parent=1 // pred_region
      %68 = dma.done [#allocation6], 8192
    $region33: #{tpu_custom_call.1} parent=1 // pred_fallthru
      _
    // Predicated region
    $region34: #{tpu_custom_call.1} parent=1 // pred_check
      _
    $region35: #{tpu_custom_call.1} parent=1 // pred_check_branch
      %70 = sbr.rel (0) target = $region37
    $region36: #{tpu_custom_call.1} parent=1 // pred_region
      %71 = dma.done [#allocation6], 2048
    $region37: #{tpu_custom_call.1} parent=1 // pred_fallthru
      _
    // Predicated region
    $region38: #{tpu_custom_call.1} parent=1 // pred_check
      _
    $region39: #{tpu_custom_call.1} parent=1 // pred_check_branch
      %73 = sbr.rel (0) target = $region41
    $region40: #{tpu_custom_call.1} parent=1 // pred_region
      %74 = dma.done [#allocation9], 16
    $region41: #{tpu_custom_call.1} parent=1 // pred_fallthru
      _
    %v76 = vld [vmem:[#allocation2] sm:$0xff]
    %v77 = vld [vmem:[#allocation2 + $0x8] sm:$0xff]
    %v78 = vld [vmem:[#allocation2 + $0x10] sm:$0xff]
    %v79 = vld [vmem:[#allocation2 + $0x18] sm:$0xff]
    %v80 = vld [vmem:[#allocation5] sm:$0xf]
    %v81 = vld [vmem:[#allocation5 + $0x4] sm:$0xf]
    %v82 = vld [vmem:[#allocation5 + $0x8] sm:$0xf]
    %v83 = vld [vmem:[#allocation5 + $0xc] sm:$0xf]
    %v84 = vld [vmem:[#allocation5 + $0x10] sm:$0xf]
    %v85 = vld [vmem:[#allocation5 + $0x14] sm:$0xf]
    %v86 = vld [vmem:[#allocation5 + $0x18] sm:$0xf]
    %v87 = vld [vmem:[#allocation5 + $0x1c] sm:$0xf]
    %v88 = vld [vmem:[#allocation5 + $0x20] sm:$0xf]
    %v89 = vld [vmem:[#allocation5 + $0x24] sm:$0xf]
    %v90 = vld [vmem:[#allocation5 + $0x28] sm:$0xf]
    %v91 = vld [vmem:[#allocation5 + $0x2c] sm:$0xf]
    %v92 = vld [vmem:[#allocation5 + $0x30] sm:$0xf]
    %v93 = vld [vmem:[#allocation5 + $0x34] sm:$0xf]
    %v94 = vld [vmem:[#allocation5 + $0x38] sm:$0xf]
    %v95 = vld [vmem:[#allocation5 + $0x3c] sm:$0xf]
    %v96 = vld [vmem:[#allocation5 + $0x40] sm:$0xf]
    %v97 = vld [vmem:[#allocation5 + $0x44] sm:$0xf]
    %v98 = vld [vmem:[#allocation5 + $0x48] sm:$0xf]
    %v99 = vld [vmem:[#allocation5 + $0x4c] sm:$0xf]
    %v100 = vld [vmem:[#allocation5 + $0x50] sm:$0xf]
    %v101 = vld [vmem:[#allocation5 + $0x54] sm:$0xf]
    %v102 = vld [vmem:[#allocation5 + $0x58] sm:$0xf]
    %v103 = vld [vmem:[#allocation5 + $0x5c] sm:$0xf]
    %v104 = vld [vmem:[#allocation5 + $0x60] sm:$0xf]
    %v105 = vld [vmem:[#allocation5 + $0x64] sm:$0xf]
    %v106 = vld [vmem:[#allocation5 + $0x68] sm:$0xf]
    %v107 = vld [vmem:[#allocation5 + $0x6c] sm:$0xf]
    %v108 = vld [vmem:[#allocation5 + $0x70] sm:$0xf]
    %v109 = vld [vmem:[#allocation5 + $0x74] sm:$0xf]
    %v110 = vld [vmem:[#allocation5 + $0x78] sm:$0xf]
    %v111 = vld [vmem:[#allocation5 + $0x7c] sm:$0xf]
    %v112 = vld [vmem:[#allocation5 + $0x80] sm:$0xf]
    %v113 = vld [vmem:[#allocation5 + $0x84] sm:$0xf]
    %v114 = vld [vmem:[#allocation5 + $0x88] sm:$0xf]
    %v115 = vld [vmem:[#allocation5 + $0x8c] sm:$0xf]
    %v116 = vld [vmem:[#allocation5 + $0x90] sm:$0xf]
    %v117 = vld [vmem:[#allocation5 + $0x94] sm:$0xf]
    %v118 = vld [vmem:[#allocation5 + $0x98] sm:$0xf]
    %v119 = vld [vmem:[#allocation5 + $0x9c] sm:$0xf]
    %v120 = vld [vmem:[#allocation5 + $0xa0] sm:$0xf]
    %v121 = vld [vmem:[#allocation5 + $0xa4] sm:$0xf]
    %v122 = vld [vmem:[#allocation5 + $0xa8] sm:$0xf]
    %v123 = vld [vmem:[#allocation5 + $0xac] sm:$0xf]
    %v124 = vld [vmem:[#allocation5 + $0xb0] sm:$0xf]
    %v125 = vld [vmem:[#allocation5 + $0xb4] sm:$0xf]
    %v126 = vld [vmem:[#allocation5 + $0xb8] sm:$0xf]
    %v127 = vld [vmem:[#allocation5 + $0xbc] sm:$0xf]
    %v128 = vld [vmem:[#allocation5 + $0xc0] sm:$0xf]
    %v129 = vld [vmem:[#allocation5 + $0xc4] sm:$0xf]
    %v130 = vld [vmem:[#allocation5 + $0xc8] sm:$0xf]
    %v131 = vld [vmem:[#allocation5 + $0xcc] sm:$0xf]
    %v132 = vld [vmem:[#allocation5 + $0xd0] sm:$0xf]
    %v133 = vld [vmem:[#allocation5 + $0xd4] sm:$0xf]
    %v134 = vld [vmem:[#allocation5 + $0xd8] sm:$0xf]
    %v135 = vld [vmem:[#allocation5 + $0xdc] sm:$0xf]
    %v136 = vld [vmem:[#allocation5 + $0xe0] sm:$0xf]
    %v137 = vld [vmem:[#allocation5 + $0xe4] sm:$0xf]
    %v138 = vld [vmem:[#allocation5 + $0xe8] sm:$0xf]
    %v139 = vld [vmem:[#allocation5 + $0xec] sm:$0xf]
    %v140 = vld [vmem:[#allocation5 + $0xf0] sm:$0xf]
    %v141 = vld [vmem:[#allocation5 + $0xf4] sm:$0xf]
    %v142 = vld [vmem:[#allocation5 + $0xf8] sm:$0xf]
    %v143 = vld [vmem:[#allocation5 + $0xfc] sm:$0xf]
    %v144 = vld [vmem:[#allocation5 + $0x100] sm:$0xf]
    %v145 = vld [vmem:[#allocation5 + $0x104] sm:$0xf]
    %v146 = vld [vmem:[#allocation5 + $0x108] sm:$0xf]
    %v147 = vld [vmem:[#allocation5 + $0x10c] sm:$0xf]
    %v148 = vld [vmem:[#allocation5 + $0x110] sm:$0xf]
    %v149 = vld [vmem:[#allocation5 + $0x114] sm:$0xf]
    %v150 = vld [vmem:[#allocation5 + $0x118] sm:$0xf]
    %v151 = vld [vmem:[#allocation5 + $0x11c] sm:$0xf]
    %v152 = vld [vmem:[#allocation5 + $0x120] sm:$0xf]
    %v153 = vld [vmem:[#allocation5 + $0x124] sm:$0xf]
    %v154 = vld [vmem:[#allocation5 + $0x128] sm:$0xf]
    %v155 = vld [vmem:[#allocation5 + $0x12c] sm:$0xf]
    %v156 = vld [vmem:[#allocation5 + $0x130] sm:$0xf]
    %v157 = vld [vmem:[#allocation5 + $0x134] sm:$0xf]
    %v158 = vld [vmem:[#allocation5 + $0x138] sm:$0xf]
    %v159 = vld [vmem:[#allocation5 + $0x13c] sm:$0xf]
    %v160 = vld [vmem:[#allocation5 + $0x140] sm:$0xf]
    %v161 = vld [vmem:[#allocation5 + $0x144] sm:$0xf]
    %v162 = vld [vmem:[#allocation5 + $0x148] sm:$0xf]
    %v163 = vld [vmem:[#allocation5 + $0x14c] sm:$0xf]
    %v164 = vld [vmem:[#allocation5 + $0x150] sm:$0xf]
    %v165 = vld [vmem:[#allocation5 + $0x154] sm:$0xf]
    %v166 = vld [vmem:[#allocation5 + $0x158] sm:$0xf]
    %v167 = vld [vmem:[#allocation5 + $0x15c] sm:$0xf]
    %v168 = vld [vmem:[#allocation5 + $0x160] sm:$0xf]
    %v169 = vld [vmem:[#allocation5 + $0x164] sm:$0xf]
    %v170 = vld [vmem:[#allocation5 + $0x168] sm:$0xf]
    %v171 = vld [vmem:[#allocation5 + $0x16c] sm:$0xf]
    %v172 = vld [vmem:[#allocation5 + $0x170] sm:$0xf]
    %v173 = vld [vmem:[#allocation5 + $0x174] sm:$0xf]
    %v174 = vld [vmem:[#allocation5 + $0x178] sm:$0xf]
    %v175 = vld [vmem:[#allocation5 + $0x17c] sm:$0xf]
    %v176 = vld [vmem:[#allocation5 + $0x180] sm:$0xf]
    %v177 = vld [vmem:[#allocation5 + $0x184] sm:$0xf]
    %v178 = vld [vmem:[#allocation5 + $0x188] sm:$0xf]
    %v179 = vld [vmem:[#allocation5 + $0x18c] sm:$0xf]
    %v180 = vld [vmem:[#allocation5 + $0x190] sm:$0xf]
    %v181 = vld [vmem:[#allocation5 + $0x194] sm:$0xf]
    %v182 = vld [vmem:[#allocation5 + $0x198] sm:$0xf]
    %v183 = vld [vmem:[#allocation5 + $0x19c] sm:$0xf]
    %v184 = vld [vmem:[#allocation5 + $0x1a0] sm:$0xf]
    %v185 = vld [vmem:[#allocation5 + $0x1a4] sm:$0xf]
    %v186 = vld [vmem:[#allocation5 + $0x1a8] sm:$0xf]
    %v187 = vld [vmem:[#allocation5 + $0x1ac] sm:$0xf]
    %v188 = vld [vmem:[#allocation5 + $0x1b0] sm:$0xf]
    %v189 = vld [vmem:[#allocation5 + $0x1b4] sm:$0xf]
    %v190 = vld [vmem:[#allocation5 + $0x1b8] sm:$0xf]
    %v191 = vld [vmem:[#allocation5 + $0x1bc] sm:$0xf]
    %v192 = vld [vmem:[#allocation5 + $0x1c0] sm:$0xf]
    %v193 = vld [vmem:[#allocation5 + $0x1c4] sm:$0xf]
    %v194 = vld [vmem:[#allocation5 + $0x1c8] sm:$0xf]
    %v195 = vld [vmem:[#allocation5 + $0x1cc] sm:$0xf]
    %v196 = vld [vmem:[#allocation5 + $0x1d0] sm:$0xf]
    %v197 = vld [vmem:[#allocation5 + $0x1d4] sm:$0xf]
    %v198 = vld [vmem:[#allocation5 + $0x1d8] sm:$0xf]
    %v199 = vld [vmem:[#allocation5 + $0x1dc] sm:$0xf]
    %v200 = vld [vmem:[#allocation5 + $0x1e0] sm:$0xf]
    %v201 = vld [vmem:[#allocation5 + $0x1e4] sm:$0xf]
    %v202 = vld [vmem:[#allocation5 + $0x1e8] sm:$0xf]
    %v203 = vld [vmem:[#allocation5 + $0x1ec] sm:$0xf]
    %v204 = vld [vmem:[#allocation5 + $0x1f0] sm:$0xf]
    %v205 = vld [vmem:[#allocation5 + $0x1f4] sm:$0xf]
    %v206 = vld [vmem:[#allocation5 + $0x1f8] sm:$0xf]
    %v207 = vld [vmem:[#allocation5 + $0x1fc] sm:$0xf]
    %v208 = vld [vmem:[%s2] sm:$0x1]
    %v210 = vlaneseq
    %v211 = vshrl.u32 %v210, 7
    %v212 = vsub.s32 0, %v211
    %v213 = vrot.slane %v208, %v212
    %v219 = vunpack.c.l.b16 %v76
    %v220 = vunpack.c.h.b16 %v76
    %v221 = vunpack.c.l.b16 %v77
    %v222 = vunpack.c.h.b16 %v77
    %v223 = vunpack.c.l.b16 %v78
    %v224 = vunpack.c.h.b16 %v78
    %v225 = vunpack.c.l.b16 %v79
    %v226 = vunpack.c.h.b16 %v79
    %v227 = vpack.c.b16 %v219, %v219
    %v228 = vpack.c.b16 %v220, %v220
    %v229 = vpack.c.b16 %v221, %v221
    %v230 = vpack.c.b16 %v222, %v222
    %v231 = vpack.c.b16 %v223, %v223
    %v232 = vpack.c.b16 %v224, %v224
    %v233 = vpack.c.b16 %v225, %v225
    %v234 = vpack.c.b16 %v226, %v226
    %v371 = vunpack.c.l.b16 %v80
    %v372 = vunpack.c.l.b16 %v81
    %v373 = vunpack.c.l.b16 %v82
    %v374 = vunpack.c.l.b16 %v83
    %v375 = vunpack.c.l.b16 %v84
    %v376 = vunpack.c.l.b16 %v85
    %v377 = vunpack.c.l.b16 %v86
    %v378 = vunpack.c.l.b16 %v87
    %v379 = vunpack.c.l.b16 %v88
    %v380 = vunpack.c.l.b16 %v89
    %v381 = vunpack.c.l.b16 %v90
    %v382 = vunpack.c.l.b16 %v91
    %v383 = vunpack.c.l.b16 %v92
    %v384 = vunpack.c.l.b16 %v93
    %v385 = vunpack.c.l.b16 %v94
    %v386 = vunpack.c.l.b16 %v95
    %v387 = vunpack.c.l.b16 %v96
    %v388 = vunpack.c.l.b16 %v97
    %v389 = vunpack.c.l.b16 %v98
    %v390 = vunpack.c.l.b16 %v99
    %v391 = vunpack.c.l.b16 %v100
    %v392 = vunpack.c.l.b16 %v101
    %v393 = vunpack.c.l.b16 %v102
    %v394 = vunpack.c.l.b16 %v103
    %v395 = vunpack.c.l.b16 %v104
    %v396 = vunpack.c.l.b16 %v105
    %v397 = vunpack.c.l.b16 %v106
    %v398 = vunpack.c.l.b16 %v107
    %v399 = vunpack.c.l.b16 %v108
    %v400 = vunpack.c.l.b16 %v109
    %v401 = vunpack.c.l.b16 %v110
    %v402 = vunpack.c.l.b16 %v111
    %v403 = vunpack.c.l.b16 %v112
    %v404 = vunpack.c.l.b16 %v113
    %v405 = vunpack.c.l.b16 %v114
    %v406 = vunpack.c.l.b16 %v115
    %v407 = vunpack.c.l.b16 %v116
    %v408 = vunpack.c.l.b16 %v117
    %v409 = vunpack.c.l.b16 %v118
    %v410 = vunpack.c.l.b16 %v119
    %v411 = vunpack.c.l.b16 %v120
    %v412 = vunpack.c.l.b16 %v121
    %v413 = vunpack.c.l.b16 %v122
    %v414 = vunpack.c.l.b16 %v123
    %v415 = vunpack.c.l.b16 %v124
    %v416 = vunpack.c.l.b16 %v125
    %v417 = vunpack.c.l.b16 %v126
    %v418 = vunpack.c.l.b16 %v127
    %v419 = vunpack.c.l.b16 %v128
    %v420 = vunpack.c.l.b16 %v129
    %v421 = vunpack.c.l.b16 %v130
    %v422 = vunpack.c.l.b16 %v131
    %v423 = vunpack.c.l.b16 %v132
    %v424 = vunpack.c.l.b16 %v133
    %v425 = vunpack.c.l.b16 %v134
    %v426 = vunpack.c.l.b16 %v135
    %v427 = vunpack.c.l.b16 %v136
    %v428 = vunpack.c.l.b16 %v137
    %v429 = vunpack.c.l.b16 %v138
    %v430 = vunpack.c.l.b16 %v139
    %v431 = vunpack.c.l.b16 %v140
    %v432 = vunpack.c.l.b16 %v141
    %v433 = vunpack.c.l.b16 %v142
    %v434 = vunpack.c.l.b16 %v143
    %v435 = vunpack.c.l.b16 %v144
    %v436 = vunpack.c.l.b16 %v145
    %v437 = vunpack.c.l.b16 %v146
    %v438 = vunpack.c.l.b16 %v147
    %v439 = vunpack.c.l.b16 %v148
    %v440 = vunpack.c.l.b16 %v149
    %v441 = vunpack.c.l.b16 %v150
    %v442 = vunpack.c.l.b16 %v151
    %v443 = vunpack.c.l.b16 %v152
    %v444 = vunpack.c.l.b16 %v153
    %v445 = vunpack.c.l.b16 %v154
    %v446 = vunpack.c.l.b16 %v155
    %v447 = vunpack.c.l.b16 %v156
    %v448 = vunpack.c.l.b16 %v157
    %v449 = vunpack.c.l.b16 %v158
    %v450 = vunpack.c.l.b16 %v159
    %v451 = vunpack.c.l.b16 %v160
    %v452 = vunpack.c.l.b16 %v161
    %v453 = vunpack.c.l.b16 %v162
    %v454 = vunpack.c.l.b16 %v163
    %v455 = vunpack.c.l.b16 %v164
    %v456 = vunpack.c.l.b16 %v165
    %v457 = vunpack.c.l.b16 %v166
    %v458 = vunpack.c.l.b16 %v167
    %v459 = vunpack.c.l.b16 %v168
    %v460 = vunpack.c.l.b16 %v169
    %v461 = vunpack.c.l.b16 %v170
    %v462 = vunpack.c.l.b16 %v171
    %v463 = vunpack.c.l.b16 %v172
    %v464 = vunpack.c.l.b16 %v173
    %v465 = vunpack.c.l.b16 %v174
    %v466 = vunpack.c.l.b16 %v175
    %v467 = vunpack.c.l.b16 %v176
    %v468 = vunpack.c.l.b16 %v177
    %v469 = vunpack.c.l.b16 %v178
    %v470 = vunpack.c.l.b16 %v179
    %v471 = vunpack.c.l.b16 %v180
    %v472 = vunpack.c.l.b16 %v181
    %v473 = vunpack.c.l.b16 %v182
    %v474 = vunpack.c.l.b16 %v183
    %v475 = vunpack.c.l.b16 %v184
    %v476 = vunpack.c.l.b16 %v185
    %v477 = vunpack.c.l.b16 %v186
    %v478 = vunpack.c.l.b16 %v187
    %v479 = vunpack.c.l.b16 %v188
    %v480 = vunpack.c.l.b16 %v189
    %v481 = vunpack.c.l.b16 %v190
    %v482 = vunpack.c.l.b16 %v191
    %v483 = vunpack.c.l.b16 %v192
    %v484 = vunpack.c.l.b16 %v193
    %v485 = vunpack.c.l.b16 %v194
    %v486 = vunpack.c.l.b16 %v195
    %v487 = vunpack.c.l.b16 %v196
    %v488 = vunpack.c.l.b16 %v197
    %v489 = vunpack.c.l.b16 %v198
    %v490 = vunpack.c.l.b16 %v199
    %v491 = vunpack.c.l.b16 %v200
    %v492 = vunpack.c.l.b16 %v201
    %v493 = vunpack.c.l.b16 %v202
    %v494 = vunpack.c.l.b16 %v203
    %v495 = vunpack.c.l.b16 %v204
    %v496 = vunpack.c.l.b16 %v205
    %v497 = vunpack.c.l.b16 %v206
    %v498 = vunpack.c.l.b16 %v207
    %v499 = vpack.c.b16 %v372, %v371
    %v500 = vpack.c.b16 %v374, %v373
    %v501 = vpack.c.b16 %v376, %v375
    %v502 = vpack.c.b16 %v378, %v377
    %v503 = vpack.c.b16 %v380, %v379
    %v504 = vpack.c.b16 %v382, %v381
    %v505 = vpack.c.b16 %v384, %v383
    %v506 = vpack.c.b16 %v386, %v385
    %v507 = vpack.c.b16 %v388, %v387
    %v508 = vpack.c.b16 %v390, %v389
    %v509 = vpack.c.b16 %v392, %v391
    %v510 = vpack.c.b16 %v394, %v393
    %v511 = vpack.c.b16 %v396, %v395
    %v512 = vpack.c.b16 %v398, %v397
    %v513 = vpack.c.b16 %v400, %v399
    %v514 = vpack.c.b16 %v402, %v401
    %v515 = vpack.c.b16 %v404, %v403
    %v516 = vpack.c.b16 %v406, %v405
    %v517 = vpack.c.b16 %v408, %v407
    %v518 = vpack.c.b16 %v410, %v409
    %v519 = vpack.c.b16 %v412, %v411
    %v520 = vpack.c.b16 %v414, %v413
    %v521 = vpack.c.b16 %v416, %v415
    %v522 = vpack.c.b16 %v418, %v417
    %v523 = vpack.c.b16 %v420, %v419
    %v524 = vpack.c.b16 %v422, %v421
    %v525 = vpack.c.b16 %v424, %v423
    %v526 = vpack.c.b16 %v426, %v425
    %v527 = vpack.c.b16 %v428, %v427
    %v528 = vpack.c.b16 %v430, %v429
    %v529 = vpack.c.b16 %v432, %v431
    %v530 = vpack.c.b16 %v434, %v433
    %v531 = vpack.c.b16 %v436, %v435
    %v532 = vpack.c.b16 %v438, %v437
    %v533 = vpack.c.b16 %v440, %v439
    %v534 = vpack.c.b16 %v442, %v441
    %v535 = vpack.c.b16 %v444, %v443
    %v536 = vpack.c.b16 %v446, %v445
    %v537 = vpack.c.b16 %v448, %v447
    %v538 = vpack.c.b16 %v450, %v449
    %v539 = vpack.c.b16 %v452, %v451
    %v540 = vpack.c.b16 %v454, %v453
    %v541 = vpack.c.b16 %v456, %v455
    %v542 = vpack.c.b16 %v458, %v457
    %v543 = vpack.c.b16 %v460, %v459
    %v544 = vpack.c.b16 %v462, %v461
    %v545 = vpack.c.b16 %v464, %v463
    %v546 = vpack.c.b16 %v466, %v465
    %v547 = vpack.c.b16 %v468, %v467
    %v548 = vpack.c.b16 %v470, %v469
    %v549 = vpack.c.b16 %v472, %v471
    %v550 = vpack.c.b16 %v474, %v473
    %v551 = vpack.c.b16 %v476, %v475
    %v552 = vpack.c.b16 %v478, %v477
    %v553 = vpack.c.b16 %v480, %v479
    %v554 = vpack.c.b16 %v482, %v481
    %v555 = vpack.c.b16 %v484, %v483
    %v556 = vpack.c.b16 %v486, %v485
    %v557 = vpack.c.b16 %v488, %v487
    %v558 = vpack.c.b16 %v490, %v489
    %v559 = vpack.c.b16 %v492, %v491
    %v560 = vpack.c.b16 %v494, %v493
    %v561 = vpack.c.b16 %v496, %v495
    %v562 = vpack.c.b16 %v498, %v497
    %627 = vmatprep.subr.bf16.mxu0 0
    %628 = vmatpush1.bf16.msra.mxu0 %v506
    %629 = vmatprep.subr.bf16.mxu0 0
    %630 = vmatpush1.bf16.msra.mxu0 %v505
    %631 = vmatprep.subr.bf16.mxu0 0
    %632 = vmatpush1.bf16.msra.mxu0 %v504
    %633 = vmatprep.subr.bf16.mxu0 0
    %634 = vmatpush1.bf16.msra.mxu0 %v503
    %635 = vmatprep.subr.bf16.mxu0 0
    %636 = vmatpush1.bf16.msra.mxu0 %v502
    %637 = vmatprep.subr.bf16.mxu0 0
    %638 = vmatpush1.bf16.msra.mxu0 %v501
    %639 = vmatprep.subr.bf16.mxu0 0
    %640 = vmatpush1.bf16.msra.mxu0 %v500
    %641 = vmatprep.subr.bf16.mxu0 0
    %642 = vmatpush1.bf16.msra.mxu0 %v499
    %643 = vmatprep.subr.bf16.mxu0 0
    %644 = vmatpush2.bf16.msra.mxu0 %v514
    %645 = vmatprep.subr.bf16.mxu0 0
    %646 = vmatpush2.bf16.msra.mxu0 %v513
    %647 = vmatprep.subr.bf16.mxu0 0
    %648 = vmatpush2.bf16.msra.mxu0 %v512
    %649 = vmatprep.subr.bf16.mxu0 0
    %650 = vmatpush2.bf16.msra.mxu0 %v511
    %651 = vmatprep.subr.bf16.mxu0 0
    %652 = vmatpush2.bf16.msra.mxu0 %v510
    %653 = vmatprep.subr.bf16.mxu0 0
    %654 = vmatpush2.bf16.msra.mxu0 %v509
    %655 = vmatprep.subr.bf16.mxu0 0
    %656 = vmatpush2.bf16.msra.mxu0 %v508
    %657 = vmatprep.subr.bf16.mxu0 0
    %658 = vmatpush2.bf16.msra.mxu0 %v507
    %659 = vmatprep.mubr.bf16.mxu0 %v228
    %660 = vmatmul.mubr.bf16.gmra.mxu0 %v227
    %v661 = vpop.f32.mrf.mxu0
    %v662 = vadd.f32 %v213, %v661
    %v663 = vpop.f32.mrf.mxu0
    %v664 = vpop.f32.mrf.mxu0
    %v665 = vpop.f32.mrf.mxu0
    %666 = vdwg.mxu0
    %667 = vmatprep.subr.bf16.mxu0 0
    %668 = vmatpush1.bf16.msra.mxu0 %v522
    %669 = vmatprep.subr.bf16.mxu0 0
    %670 = vmatpush1.bf16.msra.mxu0 %v521
    %671 = vmatprep.subr.bf16.mxu0 0
    %672 = vmatpush1.bf16.msra.mxu0 %v520
    %673 = vmatprep.subr.bf16.mxu0 0
    %674 = vmatpush1.bf16.msra.mxu0 %v519
    %675 = vmatprep.subr.bf16.mxu0 0
    %676 = vmatpush1.bf16.msra.mxu0 %v518
    %677 = vmatprep.subr.bf16.mxu0 0
    %678 = vmatpush1.bf16.msra.mxu0 %v517
    %679 = vmatprep.subr.bf16.mxu0 0
    %680 = vmatpush1.bf16.msra.mxu0 %v516
    %681 = vmatprep.subr.bf16.mxu0 0
    %682 = vmatpush1.bf16.msra.mxu0 %v515
    %683 = vmatprep.subr.bf16.mxu0 0
    %684 = vmatpush2.bf16.msra.mxu0 %v530
    %685 = vmatprep.subr.bf16.mxu0 0
    %686 = vmatpush2.bf16.msra.mxu0 %v529
    %687 = vmatprep.subr.bf16.mxu0 0
    %688 = vmatpush2.bf16.msra.mxu0 %v528
    %689 = vmatprep.subr.bf16.mxu0 0
    %690 = vmatpush2.bf16.msra.mxu0 %v527
    %691 = vmatprep.subr.bf16.mxu0 0
    %692 = vmatpush2.bf16.msra.mxu0 %v526
    %693 = vmatprep.subr.bf16.mxu0 0
    %694 = vmatpush2.bf16.msra.mxu0 %v525
    %695 = vmatprep.subr.bf16.mxu0 0
    %696 = vmatpush2.bf16.msra.mxu0 %v524
    %697 = vmatprep.subr.bf16.mxu0 0
    %698 = vmatpush2.bf16.msra.mxu0 %v523
    %699 = vmatprep.mubr.bf16.mxu0 %v230
    %700 = vmatmul.mubr.bf16.gmra.mxu0 %v229
    %v701 = vpop.f32.mrf.mxu0
    %v702 = vadd.f32 %v662, %v701
    %v703 = vpop.f32.mrf.mxu0
    %v704 = vpop.f32.mrf.mxu0
    %v705 = vpop.f32.mrf.mxu0
    %706 = vdwg.mxu0
    %707 = vmatprep.subr.bf16.mxu0 0
    %708 = vmatpush1.bf16.msra.mxu0 %v538
    %709 = vmatprep.subr.bf16.mxu0 0
    %710 = vmatpush1.bf16.msra.mxu0 %v537
    %711 = vmatprep.subr.bf16.mxu0 0
    %712 = vmatpush1.bf16.msra.mxu0 %v536
    %713 = vmatprep.subr.bf16.mxu0 0
    %714 = vmatpush1.bf16.msra.mxu0 %v535
    %715 = vmatprep.subr.bf16.mxu0 0
    %716 = vmatpush1.bf16.msra.mxu0 %v534
    %717 = vmatprep.subr.bf16.mxu0 0
    %718 = vmatpush1.bf16.msra.mxu0 %v533
    %719 = vmatprep.subr.bf16.mxu0 0
    %720 = vmatpush1.bf16.msra.mxu0 %v532
    %721 = vmatprep.subr.bf16.mxu0 0
    %722 = vmatpush1.bf16.msra.mxu0 %v531
    %723 = vmatprep.subr.bf16.mxu0 0
    %724 = vmatpush2.bf16.msra.mxu0 %v546
    %725 = vmatprep.subr.bf16.mxu0 0
    %726 = vmatpush2.bf16.msra.mxu0 %v545
    %727 = vmatprep.subr.bf16.mxu0 0
    %728 = vmatpush2.bf16.msra.mxu0 %v544
    %729 = vmatprep.subr.bf16.mxu0 0
    %730 = vmatpush2.bf16.msra.mxu0 %v543
    %731 = vmatprep.subr.bf16.mxu0 0
    %732 = vmatpush2.bf16.msra.mxu0 %v542
    %733 = vmatprep.subr.bf16.mxu0 0
    %734 = vmatpush2.bf16.msra.mxu0 %v541
    %735 = vmatprep.subr.bf16.mxu0 0
    %736 = vmatpush2.bf16.msra.mxu0 %v540
    %737 = vmatprep.subr.bf16.mxu0 0
    %738 = vmatpush2.bf16.msra.mxu0 %v539
    %739 = vmatprep.mubr.bf16.mxu0 %v232
    %740 = vmatmul.mubr.bf16.gmra.mxu0 %v231
    %v741 = vpop.f32.mrf.mxu0
    %v742 = vadd.f32 %v702, %v741
    %v743 = vpop.f32.mrf.mxu0
    %v744 = vpop.f32.mrf.mxu0
    %v745 = vpop.f32.mrf.mxu0
    %746 = vdwg.mxu0
    %747 = vmatprep.subr.bf16.mxu0 0
    %748 = vmatpush1.bf16.msra.mxu0 %v554
    %749 = vmatprep.subr.bf16.mxu0 0
    %750 = vmatpush1.bf16.msra.mxu0 %v553
    %751 = vmatprep.subr.bf16.mxu0 0
    %752 = vmatpush1.bf16.msra.mxu0 %v552
    %753 = vmatprep.subr.bf16.mxu0 0
    %754 = vmatpush1.bf16.msra.mxu0 %v551
    %755 = vmatprep.subr.bf16.mxu0 0
    %756 = vmatpush1.bf16.msra.mxu0 %v550
    %757 = vmatprep.subr.bf16.mxu0 0
    %758 = vmatpush1.bf16.msra.mxu0 %v549
    %759 = vmatprep.subr.bf16.mxu0 0
    %760 = vmatpush1.bf16.msra.mxu0 %v548
    %761 = vmatprep.subr.bf16.mxu0 0
    %762 = vmatpush1.bf16.msra.mxu0 %v547
    %763 = vmatprep.subr.bf16.mxu0 0
    %764 = vmatpush2.bf16.msra.mxu0 %v562
    %765 = vmatprep.subr.bf16.mxu0 0
    %766 = vmatpush2.bf16.msra.mxu0 %v561
    %767 = vmatprep.subr.bf16.mxu0 0
    %768 = vmatpush2.bf16.msra.mxu0 %v560
    %769 = vmatprep.subr.bf16.mxu0 0
    %770 = vmatpush2.bf16.msra.mxu0 %v559
    %771 = vmatprep.subr.bf16.mxu0 0
    %772 = vmatpush2.bf16.msra.mxu0 %v558
    %773 = vmatprep.subr.bf16.mxu0 0
    %774 = vmatpush2.bf16.msra.mxu0 %v557
    %775 = vmatprep.subr.bf16.mxu0 0
    %776 = vmatpush2.bf16.msra.mxu0 %v556
    %777 = vmatprep.subr.bf16.mxu0 0
    %778 = vmatpush2.bf16.msra.mxu0 %v555
    %779 = vmatprep.mubr.bf16.mxu0 %v234
    %780 = vmatmul.mubr.bf16.gmra.mxu0 %v233
    %v781 = vpop.f32.mrf.mxu0
    %v782 = vadd.f32 %v742, %v781
    %v783 = vpop.f32.mrf.mxu0
    %v784 = vpop.f32.mrf.mxu0
    %v785 = vpop.f32.mrf.mxu0
    %786 = vdwg.mxu0
    %v787 = vmax.f32 %v782, 0.0
    %v788 = vld [vmem:[#allocation7] sm:$0xff]
    %v789 = vld [vmem:[#allocation7 + $0x8] sm:$0xff]
    %v790 = vld [vmem:[#allocation7 + $0x10] sm:$0xff]
    %v791 = vld [vmem:[#allocation7 + $0x18] sm:$0xff]
    %v792 = vld [vmem:[#allocation7 + $0x20] sm:$0xff]
    %v793 = vld [vmem:[#allocation7 + $0x28] sm:$0xff]
    %v794 = vld [vmem:[#allocation7 + $0x30] sm:$0xff]
    %v795 = vld [vmem:[#allocation7 + $0x38] sm:$0xff]
    %v796 = vld [vmem:[#allocation7 + $0x40] sm:$0xff]
    %v797 = vld [vmem:[#allocation7 + $0x48] sm:$0xff]
    %v798 = vld [vmem:[#allocation7 + $0x50] sm:$0xff]
    %v799 = vld [vmem:[#allocation7 + $0x58] sm:$0xff]
    %v800 = vld [vmem:[#allocation7 + $0x60] sm:$0xff]
    %v801 = vld [vmem:[#allocation7 + $0x68] sm:$0xff]
    %v802 = vld [vmem:[#allocation7 + $0x70] sm:$0xff]
    %v803 = vld [vmem:[#allocation7 + $0x78] sm:$0xff]
    %v804 = vld [vmem:[#allocation8] sm:$0x1]
    %v806 = vlaneseq
    %v807 = vshrl.u32 %v806, 7
    %v808 = vsub.s32 0, %v807
    %v809 = vrot.slane %v804, %v808
    %811 = vmatprep.subr.mxu0 0.0
    %812 = vmatpush1.msra.mxu0 %v803
    %813 = vmatprep.subr.mxu0 0.0
    %814 = vmatpush1.msra.mxu0 %v802
    %815 = vmatprep.subr.mxu0 0.0
    %816 = vmatpush1.msra.mxu0 %v801
    %817 = vmatprep.subr.mxu0 0.0
    %818 = vmatpush1.msra.mxu0 %v800
    %819 = vmatprep.subr.mxu0 0.0
    %820 = vmatpush1.msra.mxu0 %v799
    %821 = vmatprep.subr.mxu0 0.0
    %822 = vmatpush1.msra.mxu0 %v798
    %823 = vmatprep.subr.mxu0 0.0
    %824 = vmatpush1.msra.mxu0 %v797
    %825 = vmatprep.subr.mxu0 0.0
    %826 = vmatpush1.msra.mxu0 %v796
    %827 = vmatprep.subr.mxu0 0.0
    %828 = vmatpush1.msra.mxu0 %v795
    %829 = vmatprep.subr.mxu0 0.0
    %830 = vmatpush1.msra.mxu0 %v794
    %831 = vmatprep.subr.mxu0 0.0
    %832 = vmatpush1.msra.mxu0 %v793
    %833 = vmatprep.subr.mxu0 0.0
    %834 = vmatpush1.msra.mxu0 %v792
    %835 = vmatprep.subr.mxu0 0.0
    %836 = vmatpush1.msra.mxu0 %v791
    %837 = vmatprep.subr.mxu0 0.0
    %838 = vmatpush1.msra.mxu0 %v790
    %839 = vmatprep.subr.mxu0 0.0
    %840 = vmatpush1.msra.mxu0 %v789
    %841 = vmatprep.subr.mxu0 0.0
    %842 = vmatpush1.msra.mxu0 %v788
    %843 = vmatprep.subr.mxu0 0.0
    %844 = vmatpush2.msra.mxu0 0.0
    %845 = vmatprep.subr.mxu0 0.0
    %846 = vmatpush2.msra.mxu0 0.0
    %847 = vmatprep.subr.mxu0 0.0
    %848 = vmatpush2.msra.mxu0 0.0
    %849 = vmatprep.subr.mxu0 0.0
    %850 = vmatpush2.msra.mxu0 0.0
    %851 = vmatprep.subr.mxu0 0.0
    %852 = vmatpush2.msra.mxu0 0.0
    %853 = vmatprep.subr.mxu0 0.0
    %854 = vmatpush2.msra.mxu0 0.0
    %855 = vmatprep.subr.mxu0 0.0
    %856 = vmatpush2.msra.mxu0 0.0
    %857 = vmatprep.subr.mxu0 0.0
    %858 = vmatpush2.msra.mxu0 0.0
    %859 = vmatprep.subr.mxu0 0.0
    %860 = vmatpush2.msra.mxu0 0.0
    %861 = vmatprep.subr.mxu0 0.0
    %862 = vmatpush2.msra.mxu0 0.0
    %863 = vmatprep.subr.mxu0 0.0
    %864 = vmatpush2.msra.mxu0 0.0
    %865 = vmatprep.subr.mxu0 0.0
    %866 = vmatpush2.msra.mxu0 0.0
    %867 = vmatprep.subr.mxu0 0.0
    %868 = vmatpush2.msra.mxu0 0.0
    %869 = vmatprep.subr.mxu0 0.0
    %870 = vmatpush2.msra.mxu0 0.0
    %871 = vmatprep.subr.mxu0 0.0
    %872 = vmatpush2.msra.mxu0 0.0
    %873 = vmatprep.subr.mxu0 0.0
    %874 = vmatpush2.msra.mxu0 0.0
    %875 = vmatprep.mubr.f32.mxu0 0.0
    %876 = vmatmul.mubr.f32.gmra.mxu0 %v787
    %v877 = vpop.f32.mrf.mxu0
    %v878 = vadd.f32 %v809, %v877
    %v879 = vpop.f32.mrf.mxu0
    %880 = vdwg.mxu0
    %v881 = vld [vmem:[%s5] sm:$0xff]
    %vm882 = vcmp.ge.u32.totalorder %v881, 2147483648
    %v883 = vsel %vm882, %v878, 0.0
    %884 = vst [vmem:[#allocation10] sm:$0xff] %v883
    // Predicated region
    $region42: #{tpu_custom_call.1} parent=1 // pred_check
      _
    $region43: #{tpu_custom_call.1} parent=1 // pred_check_branch
      %886 = sbr.rel (0) target = $region45
    $region44: #{tpu_custom_call.1} parent=1 // pred_region
      %s888 = ssub.s32 128, 128
      %889 = vsyncadd [#allocation4], %s888
      %s891 = sshll.u32 [#allocation10], 4
      %s892 = int_to_ptr.vmem [resolvable:$true] %s891
      %894 = dma.vmem_to_hbm [thread:$0]  %s892, 128, %s6, [#allocation4]
    $region45: #{tpu_custom_call.1} parent=1 // pred_fallthru
      _
    // Predicated region
    $region46: #{tpu_custom_call.1} parent=1 // pred_check
      _
    $region47: #{tpu_custom_call.1} parent=1 // pred_check_branch
      %896 = sbr.rel (0) target = $region49
    $region48: #{tpu_custom_call.1} parent=1 // pred_region
      %897 = dma.done [#allocation4], 128
    $region49: #{tpu_custom_call.1} parent=1 // pred_fallthru
      _
    %898 = vsyncpa [#allocation3], 1
    %899 = vsyncpa [#allocation6], 1
    %900 = vsyncpa [#allocation9], 1
    %901 = vsyncpa [#allocation4], 1

</llo_original>
